<compile_context>
chip_gen: v6e
topology: v6e:2x2x1
jax: 0.10.0
libtpu: 0.0.40
codegen_flags: <defaults>
</compile_context>

<pallas_src>
import functools

import jax
import jax.numpy as jnp
from jax import lax
from jax.experimental import pallas as pl
from jax.experimental.pallas import tpu as pltpu

# Module constants (Conv2d(3, 5, 3, stride=3, padding=1))
CIN, COUT = 3, 5
KH = KW = 3
STRIDE = 3
PAD = 1
K = CIN * KH * KW          # 27
KPAD = 32                  # K zero-padded to a multiple of 8 sublanes
CPAD = 128                 # Cout zero-padded to a full lane tile


def fused_conv_relu_pool_kernel(p_ref, w_ref, b_ref, o_ref, *, rowq):
    # p_ref: (M, KPAD)  bf16  im2col patch block; flat row m = b*Ho*rowq + oh*rowq + ow
    # w_ref: (KPAD, CPAD) bf16  conv weight, K ordered (kh, kw, c)
    # b_ref: (1, CPAD)   f32   bias with the constant -0.5 pre-folded
    # o_ref: (M, CPAD)   f32   conv+relu+2x2 pool result (valid window extracted outside)
    m = p_ref.shape[0]

    # Conv as a single lane-dense 2-D MXU matmul: bf16 operands, f32 accumulate.
    y = jnp.dot(p_ref[...], w_ref[...], preferred_element_type=jnp.float32)

    # Fused epilogue (f32, VPU): bias (-0.5 folded) + ReLU.
    y = jnp.maximum(y + b_ref[...], 0.0)

    # MaxPool2d(2, stride=1), separable, on the XLU via rolls.
    # roll(shift = m-1)    -> shifted[i] = y[i+1]      (W direction: ow, ow+1)
    # roll(shift = m-rowq) -> shifted[i] = y[i+rowq]   (H direction: oh, oh+1)
    # Valid outputs have oh <= Ho-2, ow <= Wo-2, so the wrap-around rows and the
    # zero-padded gap rows (ow >= Wo) never feed a valid output position.
    y = jnp.maximum(y, pltpu.roll(y, shift=m - 1, axis=0))
    y = jnp.maximum(y, pltpu.roll(y, shift=m - rowq, axis=0))

    # Single full-block, lane-dense, unmasked store.
    o_ref[...] = y


def model_forward(x_nchw, weight, bias):
    """x_nchw: (N, 3, H, W) f32; weight: (5, 3, 3, 3); bias: (5,). Returns (N, 5, Hp, Wp)."""
    N, cin, H, W = x_nchw.shape
    assert cin == CIN and weight.shape == (COUT, CIN, KH, KW)
    Hpad, Wpad = H + 2 * PAD, W + 2 * PAD
    # stride == kernel makes the unfold a pure permutation of the padded image.
    assert Hpad % STRIDE == 0 and Wpad % STRIDE == 0
    Ho, Wo = Hpad // STRIDE, Wpad // STRIDE
    Hp, Wp = Ho - 1, Wo - 1
    rowq = ((Wo + 7) // 8) * 8               # sublane-aligned row stride per oh row
    rows_per_img = Ho * rowq

    # Batch-block size: fold batch into the matmul M dim, targeting ~256 rows / step.
    # (For the toy N=2 this is the whole batch in one grid step.)
    B = max(1, min(N, max(1, 256 // rows_per_img)))
    NB = -(-N // B)                          # cdiv
    Npad = NB * B
    m_block = B * rows_per_img

    # ---- wrapper-side im2col: one input-sized permutation, no patch duplication ----
    x_nhwc = jnp.transpose(x_nchw, (0, 2, 3, 1))
    x_pad = jnp.pad(x_nhwc, ((0, Npad - N), (PAD, PAD), (PAD, PAD), (0, 0)))
    # pure reshape: [n, oh, kh, ow, kw, c] == x_pad[n, 3*oh+kh, 3*ow+kw, c]
    x_r = x_pad.reshape(Npad, Ho, KH, Wo, KW, CIN)
    x_r = jnp.transpose(x_r, (0, 1, 3, 2, 4, 5)).reshape(Npad, Ho, Wo, K)
    # Pad Wo -> rowq (sublane-aligned row stride, zero gap rows) and K -> KPAD,
    # flatten to the (M, KPAD) patch matrix, carried bf16 end-to-end.
    patches = jnp.pad(x_r, ((0, 0), (0, 0), (0, rowq - Wo), (0, KPAD - K)))
    patches = patches.reshape(Npad * rows_per_img, KPAD).astype(jnp.bfloat16)

    # Weight as a lane-dense (KPAD, CPAD) bf16 matrix, K ordered (kh, kw, c) to
    # match the patch columns; zero padding costs nothing on the MXU.
    w_perm = jnp.transpose(weight, (2, 3, 1, 0)).reshape(K, COUT)      # (27, Cout)
    w_mat = (jnp.zeros((KPAD, CPAD), jnp.float32)
             .at[:K, :COUT].set(w_perm).astype(jnp.bfloat16))
    # Fold the constant -0.5 into the bias (pad lanes get -0.5; they are stripped anyway).
    b_mat = jnp.full((1, CPAD), -0.5, jnp.float32).at[0, :COUT].add(bias)

    kernel = functools.partial(fused_conv_relu_pool_kernel, rowq=rowq)
    out = pl.pallas_call(
        kernel,
        out_shape=jax.ShapeDtypeStruct((Npad * rows_per_img, CPAD), jnp.float32),
        grid_spec=pltpu.PrefetchScalarGridSpec(
            num_scalar_prefetch=0,
            grid=(NB,),
            in_specs=[
                pl.BlockSpec((m_block, KPAD), lambda i: (i, 0)),
                pl.BlockSpec((KPAD, CPAD), lambda i: (0, 0)),
                pl.BlockSpec((1, CPAD), lambda i: (0, 0)),
            ],
            out_specs=pl.BlockSpec((m_block, CPAD), lambda i: (i, 0)),
        ),
        compiler_params=pltpu.CompilerParams(
            dimension_semantics=("parallel",)),   # batch blocks are independent
    )(patches, w_mat, b_mat)

    # Output-sized glue: extract the valid pool window, strip channel/batch padding,
    # and return the PyTorch NCHW layout.
    out = out.reshape(Npad, Ho, rowq, CPAD)[:N, :Hp, :Wp, :COUT]
    return jnp.transpose(out, (0, 3, 1, 2))


def reference_forward(x_nchw, weight, bias):
    y = lax.conv_general_dilated(
        x_nchw, weight, window_strides=(STRIDE, STRIDE),
        padding=((PAD, PAD), (PAD, PAD)),
        dimension_numbers=("NCHW", "OIHW", "NCHW"))
    y = y + bias.reshape(1, -1, 1, 1)
    y = jnp.maximum(y - 0.5, 0.0)
    y = lax.reduce_window(y, -jnp.inf, lax.max,
                          window_dimensions=(1, 1, 2, 2),
                          window_strides=(1, 1, 1, 1),
                          padding="VALID")
    return y


if __name__ == "__main__":
    key = jax.random.PRNGKey(0)
    kx, kw, kb = jax.random.split(key, 3)

    # Small shapes consistent with the module: Conv2d(3 -> 5, k=3, s=3, p=1)
    N, H, W = 2, 16, 16
    x = jax.random.normal(kx, (N, CIN, H, W), dtype=jnp.float32)
    weight = jax.random.normal(kw, (COUT, CIN, KH, KW), dtype=jnp.float32) * 0.1
    bias = jax.random.normal(kb, (COUT,), dtype=jnp.float32) * 0.1

    out = jax.block_until_ready(jax.jit(model_forward)(x, weight, bias))
    ref = jax.block_until_ready(reference_forward(x, weight, bias))

    assert out.shape == ref.shape == (N, COUT, 5, 5), (out.shape, ref.shape)
    # bf16 MXU operands with f32 accumulation -> slightly loosened tolerance.
    assert jnp.allclose(out, ref, atol=3e-2, rtol=3e-2), float(jnp.max(jnp.abs(out - ref)))

    print("KERNEL_OK")
</pallas_src>

<mosaic_0001>
module attributes {stable_mosaic.version = 11 : i64} {
  func.func @fused_conv_relu_pool_kernel(%arg0: i32, %arg1: memref<96x32xbf16, #tpu.memory_space<vmem>>, %arg2: memref<32x128xbf16, #tpu.memory_space<vmem>>, %arg3: memref<1x128xf32, #tpu.memory_space<vmem>>, %arg4: memref<96x128xf32, #tpu.memory_space<vmem>>) attributes {dimension_semantics = [#tpu.dimension_semantics<parallel>], iteration_bounds = array<i64: 1>, scalar_prefetch = 0 : i64, scratch_operands = 0 : i64, tpu.core_type = #tpu.core_type<tc>, window_params = [{transform_indices = @transform_0, window_bounds = array<i64: 96, 32>}, {pipeline_mode = #tpu.pipeline_mode<synchronous>, transform_indices = @transform_1, window_bounds = array<i64: 32, 128>}, {pipeline_mode = #tpu.pipeline_mode<synchronous>, transform_indices = @transform_2, window_bounds = array<i64: 1, 128>}, {transform_indices = @transform_3, window_bounds = array<i64: 96, 128>}]} {
    %c0 = arith.constant 0 : index
    %c0_0 = arith.constant 0 : index
    %0 = vector.load %arg1[%c0, %c0_0] : memref<96x32xbf16, #tpu.memory_space<vmem>>, vector<96x32xbf16>
    %c0_1 = arith.constant 0 : index
    %c0_2 = arith.constant 0 : index
    %1 = vector.load %arg2[%c0_1, %c0_2] : memref<32x128xbf16, #tpu.memory_space<vmem>>, vector<32x128xbf16>
    %cst = arith.constant dense<0.000000e+00> : vector<96x128xf32>
    %2 = tpu.matmul %0, %1, %cst {dimension_numbers = #tpu.dot_dimension_numbers<[1], [0], [0], [1], [0, 0, 1, 1], [], []>} : vector<96x32xbf16>, vector<32x128xbf16>, vector<96x128xf32> -> vector<96x128xf32>
    %c0_3 = arith.constant 0 : index
    %c0_4 = arith.constant 0 : index
    %3 = vector.load %arg3[%c0_3, %c0_4] : memref<1x128xf32, #tpu.memory_space<vmem>>, vector<1x128xf32>
    %4 = vector.broadcast %3 : vector<1x128xf32> to vector<96x128xf32>
    %5 = arith.addf %2, %4 : vector<96x128xf32>
    %cst_5 = arith.constant 0.000000e+00 : f32
    %6 = vector.broadcast %cst_5 : f32 to vector<96x128xf32>
    %7 = arith.maximumf %5, %6 : vector<96x128xf32>
    %c95_i32 = arith.constant 95 : i32
    %8 = tpu.dynamic_rotate %7 by %c95_i32 dim 0 : vector<96x128xf32>, i32 -> vector<96x128xf32>
    %9 = arith.maximumf %7, %8 : vector<96x128xf32>
    %c88_i32 = arith.constant 88 : i32
    %10 = tpu.dynamic_rotate %9 by %c88_i32 dim 0 : vector<96x128xf32>, i32 -> vector<96x128xf32>
    %11 = arith.maximumf %9, %10 : vector<96x128xf32>
    %c0_6 = arith.constant 0 : index
    %c0_7 = arith.constant 0 : index
    %12 = vector.load %arg4[%c0_6, %c0_7] : memref<96x128xf32, #tpu.memory_space<vmem>>, vector<96x128xf32>
    tpu.vector_store %arg4[%c0_6, %c0_7], %11 {strides = array<i32>} : memref<96x128xf32, #tpu.memory_space<vmem>>, vector<96x128xf32>,
    return
  }
  func.func @transform_0(%arg0: i32) -> (i32, i32) {
    %c0_i32 = arith.constant 0 : i32
    %c0_i32_0 = arith.constant 0 : i32
    return %arg0, %c0_i32 : i32, i32
  }
  func.func @transform_1(%arg0: i32) -> (i32, i32) {
    %c0_i32 = arith.constant 0 : i32
    %c0_i32_0 = arith.constant 0 : i32
    %c0_i32_1 = arith.constant 0 : i32
    return %c0_i32, %c0_i32_0 : i32, i32
  }
  func.func @transform_2(%arg0: i32) -> (i32, i32) {
    %c0_i32 = arith.constant 0 : i32
    %c0_i32_0 = arith.constant 0 : i32
    %c0_i32_1 = arith.constant 0 : i32
    return %c0_i32, %c0_i32_0 : i32, i32
  }
  func.func @transform_3(%arg0: i32) -> (i32, i32) {
    %c0_i32 = arith.constant 0 : i32
    %c0_i32_0 = arith.constant 0 : i32
    return %arg0, %c0_i32 : i32, i32
  }
}

</mosaic_0001>

<llo_original>
// kernel: model_forward.1
$region0: #{model_forward.1}
  #allocation0 [shape = 'u32[]', space=smem, size = 0x4, offset = 0x4, fixed_abs, tag = 'smem constant byte address 0x4 - core index']
  #allocation1 [shape = 'u32[144,128]{1,0:T(1,128)}', space=vmem, size = 0x12000, scoped, tag = 'internal scratch']
  %s0 = inlined_call_operand.vmem [shape: bf16[96,32], index: 0, kind: input, shape index: {}]
  %s1 = inlined_call_operand.vmem [shape: bf16[32,128], index: 1, kind: input, shape index: {}]
  %s2 = inlined_call_operand.vmem [shape: f32[1,128], index: 2, kind: input, shape index: {}]
  %s3 = inlined_call_operand.vmem [shape: f32[96,128], index: 3, kind: output, shape index: {}]
  %s4 = sld [smem:[#allocation0]]
  $region22: #{model_forward.1} parent=0
    _
  %s6 = ssub.s32 1, %s4
  %s7 = scalar_select 0, %s6, %s4
  // Predicated region
  $region2: #{model_forward.1} parent=0 // pred_check
    _
  $region3: #{model_forward.1} parent=0 // pred_check_branch
    %9 = sbr.rel (0) target = $region5
  $region4: #{model_forward.1} parent=0 // pred_region
    _
  $region5: #{model_forward.1} parent=0 // pred_fallthru
    _
  // Predicated region
  $region6: #{model_forward.1} parent=0 // pred_check
    _
  $region7: #{model_forward.1} parent=0 // pred_check_branch
    %11 = sbr.rel (0) target = $region9
  $region8: #{model_forward.1} parent=0 // pred_region
    _
  $region9: #{model_forward.1} parent=0 // pred_fallthru
    _
  // Predicated region
  $region10: #{model_forward.1} parent=0 // pred_check
    _
  $region11: #{model_forward.1} parent=0 // pred_check_branch
    %13 = sbr.rel (0) target = $region13
  $region12: #{model_forward.1} parent=0 // pred_region
    _
  $region13: #{model_forward.1} parent=0 // pred_fallthru
    _
  %v15 = vld [vmem:[%s0] sm:$0xf]
  %v16 = vld [vmem:[%s0 + $0x4] sm:$0xf]
  %v17 = vld [vmem:[%s0 + $0x8] sm:$0xf]
  %v18 = vld [vmem:[%s0 + $0xc] sm:$0xf]
  %v19 = vld [vmem:[%s0 + $0x10] sm:$0xf]
  %v20 = vld [vmem:[%s0 + $0x14] sm:$0xf]
  %v21 = vld [vmem:[%s0 + $0x18] sm:$0xf]
  %v22 = vld [vmem:[%s0 + $0x1c] sm:$0xf]
  %v23 = vld [vmem:[%s0 + $0x20] sm:$0xf]
  %v24 = vld [vmem:[%s0 + $0x24] sm:$0xf]
  %v25 = vld [vmem:[%s0 + $0x28] sm:$0xf]
  %v26 = vld [vmem:[%s0 + $0x2c] sm:$0xf]
  %v27 = vld [vmem:[%s1] sm:$0xf]
  %v28 = vld [vmem:[%s1 + $0x4] sm:$0xf]
  %v29 = vld [vmem:[%s1 + $0x8] sm:$0xf]
  %v30 = vld [vmem:[%s1 + $0xc] sm:$0xf]
  %v31 = vld [vmem:[%s2] sm:$0x1]
  %v33 = vlaneseq
  %v34 = vshrl.u32 %v33, 7
  %v35 = vsub.s32 0, %v34
  %v36 = vrot.slane %v31, %v35
  %v50 = vunpack.c.l.b16 %v15
  %v51 = vunpack.c.l.b16 %v16
  %v52 = vunpack.c.l.b16 %v17
  %v53 = vunpack.c.l.b16 %v18
  %v54 = vunpack.c.l.b16 %v19
  %v55 = vunpack.c.l.b16 %v20
  %v56 = vunpack.c.l.b16 %v21
  %v57 = vunpack.c.l.b16 %v22
  %v58 = vunpack.c.l.b16 %v23
  %v59 = vunpack.c.l.b16 %v24
  %v60 = vunpack.c.l.b16 %v25
  %v61 = vunpack.c.l.b16 %v26
  %v62 = vpack.c.b16 %v51, %v50
  %v63 = vpack.c.b16 %v53, %v52
  %v64 = vpack.c.b16 %v55, %v54
  %v65 = vpack.c.b16 %v57, %v56
  %v66 = vpack.c.b16 %v59, %v58
  %v67 = vpack.c.b16 %v61, %v60
  %v72 = vunpack.c.l.b16 %v27
  %v73 = vunpack.c.l.b16 %v28
  %v74 = vunpack.c.l.b16 %v29
  %v75 = vunpack.c.l.b16 %v30
  %v76 = vpack.c.b16 %v73, %v72
  %v77 = vpack.c.b16 %v75, %v74
  %vm80 = vcmask 261120
  %v82 = vsel %vm80, %v62, 0
  %v85 = vsel %vm80, %v63, 0
  %v88 = vsel %vm80, %v64, 0
  %v91 = vsel %vm80, %v65, 0
  %v94 = vsel %vm80, %v66, 0
  %v97 = vsel %vm80, %v67, 0
  %99 = vmatprep.subr.bf16.mxu0 0
  %100 = vmatpush1.bf16.msra.mxu0 0
  %101 = vmatprep.subr.bf16.mxu0 0
  %102 = vmatpush1.bf16.msra.mxu0 0
  %103 = vmatprep.subr.bf16.mxu0 0
  %104 = vmatpush1.bf16.msra.mxu0 0
  %105 = vmatprep.subr.bf16.mxu0 0
  %106 = vmatpush1.bf16.msra.mxu0 0
  %107 = vmatprep.subr.bf16.mxu0 0
  %108 = vmatpush1.bf16.msra.mxu0 0
  %109 = vmatprep.subr.bf16.mxu0 0
  %110 = vmatpush1.bf16.msra.mxu0 0
  %111 = vmatprep.subr.bf16.mxu0 0
  %112 = vmatpush1.bf16.msra.mxu0 %v77
  %113 = vmatprep.subr.bf16.mxu0 0
  %114 = vmatpush1.bf16.msra.mxu0 %v76
  %115 = vmatprep.subr.bf16.mxu0 0
  %116 = vmatpush2.bf16.msra.mxu0 0
  %117 = vmatprep.subr.bf16.mxu0 0
  %118 = vmatpush2.bf16.msra.mxu0 0
  %119 = vmatprep.subr.bf16.mxu0 0
  %120 = vmatpush2.bf16.msra.mxu0 0
  %121 = vmatprep.subr.bf16.mxu0 0
  %122 = vmatpush2.bf16.msra.mxu0 0
  %123 = vmatprep.subr.bf16.mxu0 0
  %124 = vmatpush2.bf16.msra.mxu0 0
  %125 = vmatprep.subr.bf16.mxu0 0
  %126 = vmatpush2.bf16.msra.mxu0 0
  %127 = vmatprep.subr.bf16.mxu0 0
  %128 = vmatpush2.bf16.msra.mxu0 0
  %129 = vmatprep.subr.bf16.mxu0 0
  %130 = vmatpush2.bf16.msra.mxu0 0
  %131 = vmatprep.mubr.bf16.mxu0 0
  %132 = vmatmul.mubr.bf16.gmra.mxu0 %v82
  %v133 = vpop.f32.mrf.mxu0
  %v134 = vadd.f32 %v36, %v133
  %v135 = vpop.f32.mrf.mxu0
  %v136 = vpop.f32.mrf.mxu0
  %v137 = vadd.f32 %v36, %v136
  %v138 = vpop.f32.mrf.mxu0
  %139 = vmatprep.mubr.bf16.mxu0 0
  %140 = vmatmul.mubr.bf16.gmra.mxu0 %v85
  %v141 = vpop.f32.mrf.mxu0
  %v142 = vadd.f32 %v36, %v141
  %v143 = vpop.f32.mrf.mxu0
  %v144 = vpop.f32.mrf.mxu0
  %v145 = vadd.f32 %v36, %v144
  %v146 = vpop.f32.mrf.mxu0
  %147 = vmatprep.mubr.bf16.mxu0 0
  %148 = vmatmul.mubr.bf16.gmra.mxu0 %v88
  %v149 = vpop.f32.mrf.mxu0
  %v150 = vadd.f32 %v36, %v149
  %v151 = vpop.f32.mrf.mxu0
  %v152 = vpop.f32.mrf.mxu0
  %v153 = vadd.f32 %v36, %v152
  %v154 = vpop.f32.mrf.mxu0
  %155 = vmatprep.mubr.bf16.mxu0 0
  %156 = vmatmul.mubr.bf16.gmra.mxu0 %v91
  %v157 = vpop.f32.mrf.mxu0
  %v158 = vadd.f32 %v36, %v157
  %v159 = vpop.f32.mrf.mxu0
  %v160 = vpop.f32.mrf.mxu0
  %v161 = vadd.f32 %v36, %v160
  %v162 = vpop.f32.mrf.mxu0
  %163 = vmatprep.mubr.bf16.mxu0 0
  %164 = vmatmul.mubr.bf16.gmra.mxu0 %v94
  %v165 = vpop.f32.mrf.mxu0
  %v166 = vadd.f32 %v36, %v165
  %v167 = vpop.f32.mrf.mxu0
  %v168 = vpop.f32.mrf.mxu0
  %v169 = vadd.f32 %v36, %v168
  %v170 = vpop.f32.mrf.mxu0
  %171 = vmatprep.mubr.bf16.mxu0 0
  %172 = vmatmul.mubr.bf16.gmra.mxu0 %v97
  %v173 = vpop.f32.mrf.mxu0
  %v174 = vadd.f32 %v36, %v173
  %v175 = vpop.f32.mrf.mxu0
  %v176 = vpop.f32.mrf.mxu0
  %v177 = vadd.f32 %v36, %v176
  %v178 = vpop.f32.mrf.mxu0
  %179 = vdwg.mxu0
  %v180 = vmax.f32 %v134, 0.0
  %v181 = vmax.f32 %v137, 0.0
  %v182 = vmax.f32 %v142, 0.0
  %v183 = vmax.f32 %v145, 0.0
  %v184 = vmax.f32 %v150, 0.0
  %v185 = vmax.f32 %v153, 0.0
  %v186 = vmax.f32 %v158, 0.0
  %v187 = vmax.f32 %v161, 0.0
  %v188 = vmax.f32 %v166, 0.0
  %v189 = vmax.f32 %v169, 0.0
  %v190 = vmax.f32 %v174, 0.0
  %v191 = vmax.f32 %v177, 0.0
  %v192 = vrot.slane %v180, 1
  %v193 = vrot.slane %v181, 1
  %v194 = vrot.slane %v182, 1
  %v195 = vrot.slane %v183, 1
  %v196 = vrot.slane %v184, 1
  %v197 = vrot.slane %v185, 1
  %v198 = vrot.slane %v186, 1
  %v199 = vrot.slane %v187, 1
  %v200 = vrot.slane %v188, 1
  %v201 = vrot.slane %v189, 1
  %v202 = vrot.slane %v190, 1
  %v203 = vrot.slane %v191, 1
  %v204 = vlaneseq
  %v205 = vshrl.u32 %v204, 7
  %vm206 = vcmp.lt.s32.totalorder %v205, 7
  %v207 = vsel %vm206, %v202, %v203
  %v208 = vsel %vm206, %v201, %v202
  %v209 = vsel %vm206, %v200, %v201
  %v210 = vsel %vm206, %v199, %v200
  %v211 = vsel %vm206, %v198, %v199
  %v212 = vsel %vm206, %v197, %v198
  %v213 = vsel %vm206, %v196, %v197
  %v214 = vsel %vm206, %v195, %v196
  %v215 = vsel %vm206, %v194, %v195
  %v216 = vsel %vm206, %v193, %v194
  %v217 = vsel %vm206, %v192, %v193
  %v218 = vsel %vm206, %v203, %v192
  %v219 = vmax.f32 %v180, %v217
  %v220 = vmax.f32 %v181, %v216
  %v221 = vmax.f32 %v182, %v215
  %v222 = vmax.f32 %v183, %v214
  %v223 = vmax.f32 %v184, %v213
  %v224 = vmax.f32 %v185, %v212
  %v225 = vmax.f32 %v186, %v211
  %v226 = vmax.f32 %v187, %v210
  %v227 = vmax.f32 %v188, %v209
  %v228 = vmax.f32 %v189, %v208
  %v229 = vmax.f32 %v190, %v207
  %v230 = vmax.f32 %v191, %v218
  %v231 = vmax.f32 %v219, %v220
  %v232 = vmax.f32 %v220, %v221
  %v233 = vmax.f32 %v221, %v222
  %v234 = vmax.f32 %v222, %v223
  %v235 = vmax.f32 %v223, %v224
  %v236 = vmax.f32 %v224, %v225
  %v237 = vmax.f32 %v225, %v226
  %v238 = vmax.f32 %v226, %v227
  %v239 = vmax.f32 %v227, %v228
  %v240 = vmax.f32 %v228, %v229
  %v241 = vmax.f32 %v229, %v230
  %v242 = vmax.f32 %v230, %v219
  %243 = vst [vmem:[%s3] sm:$0xff] %v231
  %244 = vst [vmem:[%s3 + $0x8] sm:$0xff] %v232
  %245 = vst [vmem:[%s3 + $0x10] sm:$0xff] %v233
  %246 = vst [vmem:[%s3 + $0x18] sm:$0xff] %v234
  %247 = vst [vmem:[%s3 + $0x20] sm:$0xff] %v235
  %248 = vst [vmem:[%s3 + $0x28] sm:$0xff] %v236
  %249 = vst [vmem:[%s3 + $0x30] sm:$0xff] %v237
  %250 = vst [vmem:[%s3 + $0x38] sm:$0xff] %v238
  %251 = vst [vmem:[%s3 + $0x40] sm:$0xff] %v239
  %252 = vst [vmem:[%s3 + $0x48] sm:$0xff] %v240
  %253 = vst [vmem:[%s3 + $0x50] sm:$0xff] %v241
  %254 = vst [vmem:[%s3 + $0x58] sm:$0xff] %v242
  // Predicated region
  $region14: #{model_forward.1} parent=0 // pred_check
    _
  $region15: #{model_forward.1} parent=0 // pred_check_branch
    %256 = sbr.rel (0) target = $region17
  $region16: #{model_forward.1} parent=0 // pred_region
    _
  $region17: #{model_forward.1} parent=0 // pred_fallthru
    _
  // Predicated region
  $region18: #{model_forward.1} parent=0 // pred_check
    _
  $region19: #{model_forward.1} parent=0 // pred_check_branch
    %258 = sbr.rel (0) target = $region21
  $region20: #{model_forward.1} parent=0 // pred_region
    _
  $region21: #{model_forward.1} parent=0 // pred_fallthru
    _

</llo_original>
